<compile_context>
chip_gen: v5e
topology: v5e:2x2
jax: 0.10.0
libtpu: 0.0.40
codegen_flags: <defaults>
</compile_context>

<pallas_src>
import functools

import jax
import jax.numpy as jnp
from jax import lax
from jax.experimental import pallas as pl
from jax.experimental.pallas import tpu as pltpu

_LANE = 128


def _threshold_kernel(x_ref, out_ref, *, threshold, last_col):
    # x_ref: (tile_b, f_block) native dtype in VMEM; out_ref: (tile_b, 2) f32.
    last = x_ref[:, last_col:last_col + 1].astype(jnp.float32)   # (tile_b, 1)
    ge = (last >= threshold).astype(out_ref.dtype)               # (tile_b, 1)
    lt = (last < threshold).astype(out_ref.dtype)                # (tile_b, 1)
    col = lax.broadcasted_iota(jnp.int32, out_ref.shape, 1)      # (tile_b, 2)
    out_ref[...] = jnp.where(col == 0, ge, lt)                   # NaN -> (0, 0)


def threshold_model(x: jax.Array, threshold: float, *, tile_b: int = 1024) -> jax.Array:
    """Forward pass of ThresholdModel. x: (B, F) -> (B, 2) float32."""
    B, F = x.shape

    # Batch tiling (parallel grid axis). Keep blocks sublane-aligned unless the
    # block spans the full batch (full-dim blocks are always legal).
    tile_b = min(tile_b, B)
    if tile_b < B:
        tile_b = max(8, (tile_b // 8) * 8)
    grid = (pl.cdiv(B, tile_b),)

    # Only fetch the 128-lane feature block that holds the last column.
    if F >= _LANE:
        f_block = _LANE
        f_idx = (F - 1) // _LANE          # last (possibly partial) lane-block
        last_col = (F - 1) % _LANE
    else:
        f_block, f_idx, last_col = F, 0, F - 1

    kernel = functools.partial(
        _threshold_kernel, threshold=float(threshold), last_col=last_col)

    return pl.pallas_call(
        kernel,
        out_shape=jax.ShapeDtypeStruct((B, 2), jnp.float32),
        grid=grid,
        in_specs=[
            pl.BlockSpec((tile_b, f_block), lambda i: (i, f_idx)),  # last lane-block of x
        ],
        out_specs=pl.BlockSpec((tile_b, 2), lambda i: (i, 0)),
        compiler_params=pltpu.CompilerParams(
            dimension_semantics=("parallel",)),
    )(x)


def threshold_model_ref(x: jax.Array, threshold: float) -> jax.Array:
    """Pure-JAX reference mirroring the PyTorch module."""
    last = x[:, -1].astype(jnp.float32)
    pred = jnp.zeros((x.shape[0], 2), dtype=jnp.float32)
    pred = pred.at[:, 0].set(jnp.where(last >= threshold, 1.0, 0.0))
    pred = pred.at[:, 1].set(jnp.where(last < threshold, 1.0, 0.0))
    return pred


if __name__ == "__main__":
    threshold = 0.1

    # Case 1: small f32 input, feature axis narrower than a lane (full-F block
    # path), including a NaN row which must map to (0, 0).
    B1, F1 = 8, 16
    x1 = jax.random.normal(jax.random.PRNGKey(0), (B1, F1), dtype=jnp.float32)
    x1 = x1.at[3, -1].set(jnp.nan)
    out1 = jax.block_until_ready(threshold_model(x1, threshold))
    ref1 = threshold_model_ref(x1, threshold)
    assert out1.shape == (B1, 2) and out1.dtype == jnp.float32
    assert jnp.array_equal(out1, ref1), (out1, ref1)

    # Case 2: bf16 input with F a multiple of 128 (last lane-block only path,
    # native-dtype input, no wrapper upcast).
    B2, F2 = 16, 256
    x2 = jax.random.normal(jax.random.PRNGKey(1), (B2, F2), dtype=jnp.float32).astype(jnp.bfloat16)
    out2 = jax.block_until_ready(threshold_model(x2, threshold))
    ref2 = threshold_model_ref(x2, threshold)
    assert out2.shape == (B2, 2) and out2.dtype == jnp.float32
    assert jnp.array_equal(out2, ref2), (out2, ref2)

    # Case 3: F >= 128 but not a multiple of 128 (partial edge lane-block path).
    B3, F3 = 32, 200
    x3 = jax.random.normal(jax.random.PRNGKey(2), (B3, F3), dtype=jnp.float32)
    out3 = jax.block_until_ready(threshold_model(x3, threshold))
    ref3 = threshold_model_ref(x3, threshold)
    assert out3.shape == (B3, 2) and out3.dtype == jnp.float32
    assert jnp.array_equal(out3, ref3), (out3, ref3)

    print("KERNEL_OK")
</pallas_src>

<mosaic_0001>
module attributes {stable_mosaic.version = 11 : i64} {
  func.func @_threshold_kernel(%arg0: i32, %arg1: memref<8x16xf32, #tpu.memory_space<vmem>>, %arg2: memref<8x2xf32, #tpu.memory_space<vmem>>) attributes {dimension_semantics = [#tpu.dimension_semantics<parallel>], iteration_bounds = array<i64: 1>, scalar_prefetch = 0 : i64, scratch_operands = 0 : i64, tpu.core_type = #tpu.core_type<tc>, window_params = [{transform_indices = @transform_0, window_bounds = array<i64: 8, 16>}, {transform_indices = @transform_1, window_bounds = array<i64: 8, 2>}]} {
    %c0 = arith.constant 0 : index
    %c15 = arith.constant 15 : index
    %0 = vector.load %arg1[%c0, %c15] : memref<8x16xf32, #tpu.memory_space<vmem>>, vector<8x1xf32>
    %cst = arith.constant 1.000000e-01 : f32
    %1 = vector.broadcast %cst : f32 to vector<8x1xf32>
    %2 = arith.cmpf oge, %0, %1 : vector<8x1xf32>
    %3 = arith.extui %2 : vector<8x1xi1> to vector<8x1xi32>
    %4 = arith.sitofp %3 : vector<8x1xi32> to vector<8x1xf32>
    %cst_0 = arith.constant 1.000000e-01 : f32
    %5 = vector.broadcast %cst_0 : f32 to vector<8x1xf32>
    %6 = arith.cmpf olt, %0, %5 : vector<8x1xf32>
    %7 = arith.extui %6 : vector<8x1xi1> to vector<8x1xi32>
    %8 = arith.sitofp %7 : vector<8x1xi32> to vector<8x1xf32>
    %9 = tpu.iota {dimensions = array<i32: 1>} : vector<8x2xi32>
    %c0_i32 = arith.constant 0 : i32
    %10 = vector.broadcast %c0_i32 : i32 to vector<8x2xi32>
    %11 = arith.cmpi eq, %9, %10 : vector<8x2xi32>
    %12 = vector.shape_cast %4 : vector<8x1xf32> to vector<8x1xf32>
    %13 = vector.broadcast %12 : vector<8x1xf32> to vector<8x2xf32>
    %14 = vector.shape_cast %8 : vector<8x1xf32> to vector<8x1xf32>
    %15 = vector.broadcast %14 : vector<8x1xf32> to vector<8x2xf32>
    %16 = arith.select %11, %13, %15 : vector<8x2xi1>, vector<8x2xf32>
    %c0_1 = arith.constant 0 : index
    %c0_2 = arith.constant 0 : index
    %17 = vector.load %arg2[%c0_1, %c0_2] : memref<8x2xf32, #tpu.memory_space<vmem>>, vector<8x2xf32>
    tpu.vector_store %arg2[%c0_1, %c0_2], %16 {strides = array<i32>} : memref<8x2xf32, #tpu.memory_space<vmem>>, vector<8x2xf32>,
    return
  }
  func.func @transform_0(%arg0: i32) -> (i32, i32) {
    %c0_i32 = arith.constant 0 : i32
    %c0_i32_0 = arith.constant 0 : i32
    return %arg0, %c0_i32 : i32, i32
  }
  func.func @transform_1(%arg0: i32) -> (i32, i32) {
    %c0_i32 = arith.constant 0 : i32
    %c0_i32_0 = arith.constant 0 : i32
    return %arg0, %c0_i32 : i32, i32
  }
}

</mosaic_0001>

<llo_original>
// kernel: tpu_custom_call.1
$region0: #{tpu_custom_call.1}
  #allocation0 [shape = 'u32[]', space=smem, size = 0x4, offset = 0x4, fixed_abs, tag = 'smem constant byte address 0x4 - core index']
  #allocation1 [shape = 'u32[72,128]{1,0:T(1,128)}', space=vmem, size = 0x9000, scoped, tag = 'internal scratch']
  %s0 = inlined_call_operand.hbm [shape: f32[8,16], index: 0, kind: input, shape index: {}]
  %s1 = inlined_call_operand.vmem [shape: f32[8,2], index: 1, kind: output, shape index: {}]
  %s2 = sld [smem:[#allocation0]]
  $region18: #{tpu_custom_call.1} parent=0
    _
  %s4 = ssub.s32 1, %s2
  %s5 = scalar_select 0, %s4, %s2
  $region1: #{tpu_custom_call.1} parent=0
    #allocation2 [shape = 'u8[4096]{0}', space=vmem, size = 0x1000, scoped, tag = 'input window, operand 0, single buffered']
    #allocation3 [shape = 's32[1]{0}', space=sflag, size = 0x4, scoped, tag = 'scoped memory for tpu_custom_call.1']
    %6 = vsyncpa [#allocation3], 0
    // Predicated region
    $region2: #{tpu_custom_call.1} parent=1 // pred_check
      _
    $region3: #{tpu_custom_call.1} parent=1 // pred_check_branch
      %8 = sbr.rel (0) target = $region5
    $region4: #{tpu_custom_call.1} parent=1 // pred_region
      %10 = vsyncadd [#allocation3], 0
      %s12 = sshll.u32 %s0, 4
      %s13 = int_to_ptr.hbm [resolvable:$true] %s12
      %s14 = sshll.u32 [#allocation2], 4
      %s15 = int_to_ptr.vmem [resolvable:$true] %s14
      %17 = dma.hbm_to_vmem [thread:$0]  %s13, 128, %s15, [#allocation3]
    $region5: #{tpu_custom_call.1} parent=1 // pred_fallthru
      _
    // Predicated region
    $region6: #{tpu_custom_call.1} parent=1 // pred_check
      _
    $region7: #{tpu_custom_call.1} parent=1 // pred_check_branch
      %19 = sbr.rel (0) target = $region9
    $region8: #{tpu_custom_call.1} parent=1 // pred_region
      %21 = dma.done [#allocation3], 128
    $region9: #{tpu_custom_call.1} parent=1 // pred_fallthru
      _
    %v22 = vld [vmem:[#allocation2] sm:$0xff]
    %vm23 = vcmp.ge.f32.partialorder %v22, 0.1
    %v24 = vsel %vm23, 1, 0
    %v25 = vcvt.s32.f32 %v24
    %vm26 = vcmp.lt.f32.partialorder %v22, 0.1
    %v27 = vsel %vm26, 1, 0
    %v28 = vcvt.s32.f32 %v27
    %v29 = vlaneseq
    %v30 = vand.u32 %v29, 127
    %vm31 = vcmp.eq.s32.totalorder %v30, 0
    %33 = vset.pattern.permute.xlu0 15
    %34 = vperm.xlu0 %33, %v25
    %v35 = vpop.permute.xlu0 %34
    %38 = vset.pattern.permute.xlu0 15
    %39 = vperm.xlu0 %38, %v28
    %v40 = vpop.permute.xlu0 %39
    %v42 = vsel %vm31, %v35, %v40
    %vm43 = vcmask 15360
    %44 = vst.msk [vmem:[%s1] sm:$0xff] %vm43, %v42
    // Predicated region
    $region10: #{tpu_custom_call.1} parent=1 // pred_check
      _
    $region11: #{tpu_custom_call.1} parent=1 // pred_check_branch
      %46 = sbr.rel (0) target = $region13
    $region12: #{tpu_custom_call.1} parent=1 // pred_region
      _
    $region13: #{tpu_custom_call.1} parent=1 // pred_fallthru
      _
    // Predicated region
    $region14: #{tpu_custom_call.1} parent=1 // pred_check
      _
    $region15: #{tpu_custom_call.1} parent=1 // pred_check_branch
      %48 = sbr.rel (0) target = $region17
    $region16: #{tpu_custom_call.1} parent=1 // pred_region
      _
    $region17: #{tpu_custom_call.1} parent=1 // pred_fallthru
      _
    %49 = vsyncpa [#allocation3], 1

</llo_original>
